<compile_context>
chip_gen: v5e
topology: v5e:2x2
jax: 0.10.0
libtpu: 0.0.40
codegen_flags: <defaults>
</compile_context>

<pallas_src>
import functools

import jax
import jax.numpy as jnp
from jax.experimental import pallas as pl
from jax.experimental.pallas import tpu as pltpu

LANES = 128      # lane width of a vreg / f32 tile
SUBLANES = 8     # sublane depth of an f32 tile


def logreg_kernel(w_ref, b_ref, x0_ref, x1_ref, o_ref):
    # w_ref: (2,) f32 in SMEM, b_ref: (1,) f32 in SMEM.
    # x0_ref / x1_ref: (block_r, 128) f32 feature planes in VMEM (dense 8x128 tiles).
    # o_ref: (block_r, 128) f32 in VMEM (dense, unmasked stores).
    w0 = w_ref[0]
    w1 = w_ref[1]
    b = b_ref[0]
    z = x0_ref[...] * w0 + x1_ref[...] * w1 + b          # VPU broadcasted FMA
    # sigmoid(z) = 0.5 * tanh(0.5 * z) + 0.5  -> single EUP op, no divide.
    o_ref[...] = 0.5 * jnp.tanh(0.5 * z) + 0.5


@functools.partial(jax.jit, static_argnames=("block_r",))
def logistic_regression(x, w, b, *, block_r=None):
    """x: (N, 2) f32, w: (1, 2) f32, b: (1,) f32 -> (N, 1) f32 = sigmoid(x @ w.T + b)."""
    n = x.shape[0]
    rows = pl.cdiv(n, LANES)                      # 128 samples per lane-row
    if block_r is None:
        # <= 1 MiB per input tile; for large inputs also leave >= ~8 grid steps so
        # the "parallel" axis can split across v7x's two TensorCores (no-op on
        # single-TC v5e/v6e).
        block_r = min(2048, max(SUBLANES, pl.cdiv(rows, 8)))
    block_r = pl.cdiv(block_r, SUBLANES) * SUBLANES   # multiple of 8 sublanes
    r_pad = pl.cdiv(rows, block_r) * block_r
    n_pad = r_pad * LANES
    grid = (r_pad // block_r,)

    # Single fused layout pass under jit: pad the sample tail, free row-major
    # reshape to (r_pad, 128, 2), then split the two feature columns into dense
    # (r_pad, 128) planes.  No transpose over the (large) sample axis.
    x_pad = jnp.pad(x.astype(jnp.float32), ((0, n_pad - n), (0, 0)))   # (n_pad, 2)
    planes = x_pad.reshape(r_pad, LANES, 2)
    x0p = planes[:, :, 0]                                              # (r_pad, 128)
    x1p = planes[:, :, 1]                                              # (r_pad, 128)

    w_flat = w.reshape(2).astype(jnp.float32)
    b_flat = b.reshape(1).astype(jnp.float32)

    out = pl.pallas_call(
        logreg_kernel,
        out_shape=jax.ShapeDtypeStruct((r_pad, LANES), jnp.float32),
        grid=grid,
        in_specs=[
            pl.BlockSpec(memory_space=pltpu.MemorySpace.SMEM),        # w scalars
            pl.BlockSpec(memory_space=pltpu.MemorySpace.SMEM),        # b scalar
            pl.BlockSpec((block_r, LANES), lambda i: (i, 0)),         # x0 plane tile
            pl.BlockSpec((block_r, LANES), lambda i: (i, 0)),         # x1 plane tile
        ],
        out_specs=pl.BlockSpec((block_r, LANES), lambda i: (i, 0)),
        compiler_params=pltpu.CompilerParams(
            dimension_semantics=("parallel",),
        ),
    )(w_flat, b_flat, x0p, x1p)

    # Free reshape back to sample-major (N, 1); slice off the padded tail.
    return out.reshape(n_pad, 1)[:n]


if __name__ == "__main__":
    key = jax.random.PRNGKey(0)
    kx0, kx1, kw, kb = jax.random.split(key, 4)

    # Synthetic data mirroring the PyTorch script: two Gaussian blobs in R^2.
    n_per = 100
    xa = 2.0 + jax.random.normal(kx0, (n_per, 2), dtype=jnp.float32)
    xb = -2.0 + jax.random.normal(kx1, (n_per, 2), dtype=jnp.float32)
    x = jnp.concatenate([xa, xb], axis=0)                      # (200, 2) float32

    # nn.Linear(2, 1) default init: U(-1/sqrt(in_features), 1/sqrt(in_features))
    bound = 1.0 / jnp.sqrt(2.0)
    w = jax.random.uniform(kw, (1, 2), minval=-bound, maxval=bound, dtype=jnp.float32)
    b = jax.random.uniform(kb, (1,), minval=-bound, maxval=bound, dtype=jnp.float32)

    out = logistic_regression(x, w, b)
    out = jax.block_until_ready(out)

    # Reference check in plain JAX (PyTorch forward: sigmoid(x @ w.T + b)).
    ref = 1.0 / (1.0 + jnp.exp(-(x @ w.T + b)))
    assert out.shape == (200, 1)
    assert jnp.allclose(out, ref, atol=5e-6, rtol=1e-5), float(jnp.max(jnp.abs(out - ref)))

    print("KERNEL_OK")
</pallas_src>

<mosaic_0001>
module attributes {stable_mosaic.version = 11 : i64} {
  func.func @logreg_kernel(%arg0: i32, %arg1: memref<2xf32, #tpu.memory_space<smem>>, %arg2: memref<1xf32, #tpu.memory_space<smem>>, %arg3: memref<8x128xf32, #tpu.memory_space<vmem>>, %arg4: memref<8x128xf32, #tpu.memory_space<vmem>>, %arg5: memref<8x128xf32, #tpu.memory_space<vmem>>) attributes {dimension_semantics = [#tpu.dimension_semantics<parallel>], iteration_bounds = array<i64: 1>, scalar_prefetch = 0 : i64, scratch_operands = 0 : i64, tpu.core_type = #tpu.core_type<tc>, window_params = [{transform_indices = @transform_0, window_bounds = array<i64: 2>}, {transform_indices = @transform_1, window_bounds = array<i64: 1>}, {transform_indices = @transform_2, window_bounds = array<i64: 8, 128>}, {transform_indices = @transform_3, window_bounds = array<i64: 8, 128>}, {transform_indices = @transform_4, window_bounds = array<i64: 8, 128>}]} {
    %c0 = arith.constant 0 : index
    %0 = memref.load %arg1[%c0] : memref<2xf32, #tpu.memory_space<smem>>
    %c1 = arith.constant 1 : index
    %1 = memref.load %arg1[%c1] : memref<2xf32, #tpu.memory_space<smem>>
    %c0_0 = arith.constant 0 : index
    %2 = memref.load %arg2[%c0_0] : memref<1xf32, #tpu.memory_space<smem>>
    %c0_1 = arith.constant 0 : index
    %c0_2 = arith.constant 0 : index
    %3 = vector.load %arg3[%c0_1, %c0_2] : memref<8x128xf32, #tpu.memory_space<vmem>>, vector<8x128xf32>
    %4 = vector.broadcast %0 : f32 to vector<8x128xf32>
    %5 = arith.mulf %3, %4 : vector<8x128xf32>
    %c0_3 = arith.constant 0 : index
    %c0_4 = arith.constant 0 : index
    %6 = vector.load %arg4[%c0_3, %c0_4] : memref<8x128xf32, #tpu.memory_space<vmem>>, vector<8x128xf32>
    %7 = vector.broadcast %1 : f32 to vector<8x128xf32>
    %8 = arith.mulf %6, %7 : vector<8x128xf32>
    %9 = arith.addf %5, %8 : vector<8x128xf32>
    %10 = vector.broadcast %2 : f32 to vector<8x128xf32>
    %11 = arith.addf %9, %10 : vector<8x128xf32>
    %cst = arith.constant 5.000000e-01 : f32
    %12 = vector.broadcast %cst : f32 to vector<8x128xf32>
    %13 = arith.mulf %12, %11 : vector<8x128xf32>
    %14 = math.tanh %13 : vector<8x128xf32>
    %cst_5 = arith.constant 5.000000e-01 : f32
    %15 = vector.broadcast %cst_5 : f32 to vector<8x128xf32>
    %16 = arith.mulf %15, %14 : vector<8x128xf32>
    %cst_6 = arith.constant 5.000000e-01 : f32
    %17 = vector.broadcast %cst_6 : f32 to vector<8x128xf32>
    %18 = arith.addf %16, %17 : vector<8x128xf32>
    %c0_7 = arith.constant 0 : index
    %c0_8 = arith.constant 0 : index
    %19 = vector.load %arg5[%c0_7, %c0_8] : memref<8x128xf32, #tpu.memory_space<vmem>>, vector<8x128xf32>
    tpu.vector_store %arg5[%c0_7, %c0_8], %18 {strides = array<i32>} : memref<8x128xf32, #tpu.memory_space<vmem>>, vector<8x128xf32>,
    return
  }
  func.func @transform_0(%arg0: i32) -> i32 {
    %c0_i32 = arith.constant 0 : i32
    %c0_i32_0 = arith.constant 0 : i32
    return %c0_i32 : i32
  }
  func.func @transform_1(%arg0: i32) -> i32 {
    %c0_i32 = arith.constant 0 : i32
    %c0_i32_0 = arith.constant 0 : i32
    return %c0_i32 : i32
  }
  func.func @transform_2(%arg0: i32) -> (i32, i32) {
    %c0_i32 = arith.constant 0 : i32
    %c0_i32_0 = arith.constant 0 : i32
    return %arg0, %c0_i32 : i32, i32
  }
  func.func @transform_3(%arg0: i32) -> (i32, i32) {
    %c0_i32 = arith.constant 0 : i32
    %c0_i32_0 = arith.constant 0 : i32
    return %arg0, %c0_i32 : i32, i32
  }
  func.func @transform_4(%arg0: i32) -> (i32, i32) {
    %c0_i32 = arith.constant 0 : i32
    %c0_i32_0 = arith.constant 0 : i32
    return %arg0, %c0_i32 : i32, i32
  }
}

</mosaic_0001>

<llo_original>
// kernel: logistic_regression.1
$region0: #{logistic_regression.1}
  #allocation0 [shape = 'u32[]', space=smem, size = 0x4, offset = 0x4, fixed_abs, tag = 'smem constant byte address 0x4 - core index']
  #allocation1 [shape = 'u32[72,128]{1,0:T(1,128)}', space=vmem, size = 0x9000, scoped, tag = 'internal scratch']
  #allocation2 [shape = 'f32[1]{0:T(128)S(6)}', space=smem, size = 0x200, scoped, tag = 'scoped memory for logistic_regression.1']
  %s0 = inlined_call_operand.vmem [shape: f32[2], index: 0, kind: input, shape index: {}]
  %s1 = inlined_call_operand.<no memory space> [shape: f32[1], index: 1, kind: input, shape index: {}]
  %s2 = inlined_call_operand.vmem [shape: f32[8,128], index: 2, kind: input, shape index: {}]
  %s3 = inlined_call_operand.vmem [shape: f32[8,128], index: 3, kind: input, shape index: {}]
  %s4 = inlined_call_operand.vmem [shape: f32[8,128], index: 4, kind: output, shape index: {}]
  %s5 = sld [smem:[#allocation0]]
  $region30: #{logistic_regression.1} parent=0
    _
  %s7 = ssub.s32 1, %s5
  %s8 = scalar_select 0, %s7, %s5
  %9 = sst [smem:[#allocation2]] %s1
  $region1: #{logistic_regression.1} parent=0
    #allocation3 [shape = 'u8[512]{0}', space=smem, size = 0x200, scoped, tag = 'input window, operand 0, single buffered']
    #allocation4 [shape = 's32[1]{0}', space=sflag, size = 0x4, scoped, tag = 'scoped memory for logistic_regression.1']
    %10 = vsyncpa [#allocation4], 0
    // Predicated region
    $region2: #{logistic_regression.1} parent=1 // pred_check
      _
    $region3: #{logistic_regression.1} parent=1 // pred_check_branch
      %12 = sbr.rel (0) target = $region5
    $region4: #{logistic_regression.1} parent=1 // pred_region
      %14 = vsyncadd [#allocation4], 0
      %s16 = sshll.u32 %s0, 4
      %s17 = int_to_ptr.vmem [resolvable:$true] %s16
      %19 = dma.vmem_to_smem %s17, 16, [#allocation3], [#allocation4]
    $region5: #{logistic_regression.1} parent=1 // pred_fallthru
      _
    // Predicated region
    $region6: #{logistic_regression.1} parent=1 // pred_check
      _
    $region7: #{logistic_regression.1} parent=1 // pred_check_branch
      %21 = sbr.rel (0) target = $region9
    $region8: #{logistic_regression.1} parent=1 // pred_region
      _
    $region9: #{logistic_regression.1} parent=1 // pred_fallthru
      _
    // Predicated region
    $region10: #{logistic_regression.1} parent=1 // pred_check
      _
    $region11: #{logistic_regression.1} parent=1 // pred_check_branch
      %23 = sbr.rel (0) target = $region13
    $region12: #{logistic_regression.1} parent=1 // pred_region
      _
    $region13: #{logistic_regression.1} parent=1 // pred_fallthru
      _
    // Predicated region
    $region14: #{logistic_regression.1} parent=1 // pred_check
      _
    $region15: #{logistic_regression.1} parent=1 // pred_check_branch
      %25 = sbr.rel (0) target = $region17
    $region16: #{logistic_regression.1} parent=1 // pred_region
      _
    $region17: #{logistic_regression.1} parent=1 // pred_fallthru
      _
    // Predicated region
    $region18: #{logistic_regression.1} parent=1 // pred_check
      _
    $region19: #{logistic_regression.1} parent=1 // pred_check_branch
      %27 = sbr.rel (0) target = $region21
    $region20: #{logistic_regression.1} parent=1 // pred_region
      %29 = dma.done [#allocation4], 16
    $region21: #{logistic_regression.1} parent=1 // pred_fallthru
      _
    %30 = sfence
    %s31 = sld [smem:[#allocation3]]
    %s32 = sld [smem:[#allocation3 + $0x1]]
    %s33 = sld [smem:[#allocation2]]
    %v34 = vld [vmem:[%s2] sm:$0xff]
    %v35 = vstv %s31
    %v36 = vmul.f32 %v34, %v35
    %v37 = vld [vmem:[%s3] sm:$0xff]
    %v38 = vstv %s32
    %v39 = vmul.f32 %v37, %v38
    %v40 = vadd.f32 %v36, %v39
    %v41 = vstv %s33
    %v42 = vadd.f32 %v40, %v41
    %v43 = vmul.f32 %v42, 0.5
    %v44 = vtanh.pop %v43
    %v45 = vmul.f32 %v44, 0.5
    %v46 = vadd.f32 %v45, 0.5
    %47 = vst [vmem:[%s4] sm:$0xff] %v46
    // Predicated region
    $region22: #{logistic_regression.1} parent=1 // pred_check
      _
    $region23: #{logistic_regression.1} parent=1 // pred_check_branch
      %49 = sbr.rel (0) target = $region25
    $region24: #{logistic_regression.1} parent=1 // pred_region
      _
    $region25: #{logistic_regression.1} parent=1 // pred_fallthru
      _
    // Predicated region
    $region26: #{logistic_regression.1} parent=1 // pred_check
      _
    $region27: #{logistic_regression.1} parent=1 // pred_check_branch
      %51 = sbr.rel (0) target = $region29
    $region28: #{logistic_regression.1} parent=1 // pred_region
      _
    $region29: #{logistic_regression.1} parent=1 // pred_fallthru
      _
    %52 = vsyncpa [#allocation4], 1

</llo_original>
